<compile_context>
chip_gen: v5e
topology: v5e:2x2
jax: 0.10.0
libtpu: 0.0.40
codegen_flags: <defaults>
</compile_context>

<pallas_src>
import jax
import jax.numpy as jnp
from jax.experimental import pallas as pl
from jax.experimental.pallas import tpu as pltpu

LANES = 128


def _round_up(x, m):
    return (x + m - 1) // m * m


# ----------------------------------------------------------------------------
# Kernel: fused 3-layer MLP on one lane-dense batch tile.
# ----------------------------------------------------------------------------
def mlp_kernel(x_ref, w1_ref, b1_ref, w2_ref, b2_ref, w3_ref, b3_ref, o_ref):
    compute_dtype = w1_ref.dtype            # f32 or bf16 (weights pre-cast)
    x = x_ref[...].astype(compute_dtype)    # [TBp, pack*F]

    # Layer 1: Linear -> ReLU    (BN1/Dropout folded away / identity)
    h = jnp.dot(x, w1_ref[...], preferred_element_type=jnp.float32)
    h = jnp.maximum(h + b1_ref[...], 0.0)   # f32 epilogue (v5e-friendly)

    # Layer 2: Linear(+folded BN1) -> ReLU
    h = jnp.dot(h.astype(compute_dtype), w2_ref[...],
                preferred_element_type=jnp.float32)
    h = jnp.maximum(h + b2_ref[...], 0.0)

    # Layer 3: Linear(+folded BN2)
    y = jnp.dot(h.astype(compute_dtype), w3_ref[...],
                preferred_element_type=jnp.float32)
    y = y + b3_ref[...]

    o_ref[...] = y.astype(o_ref.dtype)      # lane-dense [TBp, pack*F] store


# ----------------------------------------------------------------------------
# Parameter preparation: fold BN into the following Linear, then batch-pack.
# ----------------------------------------------------------------------------
def fold_and_pack_params(raw, *, compute_dtype=jnp.float32):
    eps = raw["eps"]
    F, H = raw["w1"].shape

    # BN -> per-feature affine (eval mode).
    s1 = raw["g1"] / jnp.sqrt(raw["v1"] + eps)
    t1 = raw["be1"] - s1 * raw["m1"]
    s2 = raw["g2"] / jnp.sqrt(raw["v2"] + eps)
    t2 = raw["be2"] - s2 * raw["m2"]

    # Fold BN1 into W2/b2 and BN2 into W3/b3.
    w1, b1 = raw["w1"], raw["b1"]
    w2 = raw["w2"] * s1.reshape(H, 1)          # scale input-rows of W2
    b2 = raw["b2"] + t1 @ raw["w2"]
    w3 = raw["w3"] * s2.reshape(H, 1)
    b3 = raw["b3"] + t2 @ raw["w3"]

    # Batch packing: pack rows of the batch into lanes (block-diag weights).
    pack = LANES // F if LANES % F == 0 else 1
    eye = jnp.eye(pack, dtype=jnp.float32)

    def pack_w(w):
        return jnp.kron(eye, w).astype(compute_dtype)

    def pack_b(b):
        return jnp.tile(b, (1, pack)).astype(jnp.float32)  # biases stay f32

    return dict(
        pack=pack, F=F, H=H,
        w1=pack_w(w1), b1=pack_b(b1),
        w2=pack_w(w2), b2=pack_b(b2),
        w3=pack_w(w3), b3=pack_b(b3),
    )


# ----------------------------------------------------------------------------
# Wrapper
# ----------------------------------------------------------------------------
def dl_channel_estimator_forward(x, pp, *, block_rows=512):
    """x: [B, F] float32. pp: fold_and_pack_params(...). Returns [B, F] f32.

    block_rows = packed rows per grid step (each packed row = `pack` batch
    rows).  512 packed rows * 128 lanes * 4 B ~= 256 KiB per x tile: far below
    even v7x's 64 MiB VMEM, but large enough to amortize the ~0.35 us
    per-grid-step overhead.  Raise vmem_limit_bytes only if you grow this a lot.
    """
    B, F = x.shape
    pack = pp["pack"]
    assert F == pp["F"], "feature size mismatch with packed params"
    FP = pack * F                                  # lane-dense width (128)

    # Tile sizing over packed batch rows.
    bp_rows = pl.cdiv(B, pack)
    tbp = _round_up(min(_round_up(block_rows, 8), _round_up(bp_rows, 8)), 8)
    bp_rows_padded = _round_up(bp_rows, tbp)
    b_padded = bp_rows_padded * pack
    if b_padded != B:
        x = jnp.pad(x, ((0, b_padded - B), (0, 0)))
    xp = x.reshape(bp_rows_padded, FP)             # pure layout view (lane-dense)

    grid = (bp_rows_padded // tbp,)

    row_spec = pl.BlockSpec((tbp, FP), lambda i: (i, 0))

    def const_spec(shape):
        # Whole parameter resident as one block; constant index_map -> no re-DMA.
        return pl.BlockSpec(shape, lambda i, _s=shape: (0,) * len(_s))

    out = pl.pallas_call(
        mlp_kernel,
        out_shape=jax.ShapeDtypeStruct((bp_rows_padded, FP), jnp.float32),
        grid=grid,
        in_specs=[
            row_spec,
            const_spec(pp["w1"].shape), const_spec(pp["b1"].shape),
            const_spec(pp["w2"].shape), const_spec(pp["b2"].shape),
            const_spec(pp["w3"].shape), const_spec(pp["b3"].shape),
        ],
        out_specs=pl.BlockSpec((tbp, FP), lambda i: (i, 0)),
        compiler_params=pltpu.CompilerParams(
            dimension_semantics=("parallel",),     # v7x: 2 TCs split the batch
        ),
    )(xp, pp["w1"], pp["b1"], pp["w2"], pp["b2"], pp["w3"], pp["b3"])

    return out.reshape(b_padded, F)[:B]


# ----------------------------------------------------------------------------
# Deterministic synthetic parameters matching the PyTorch module's shapes.
# Linear weights are stored [in, out] (transposed vs PyTorch) so the kernel
# computes x @ W directly.
# ----------------------------------------------------------------------------
def init_params(key, input_size, hidden_size):
    ks = jax.random.split(key, 14)

    def lin(kw, kb, fan_in, fan_out):
        bound = 1.0 / jnp.sqrt(jnp.float32(fan_in))
        w = jax.random.uniform(kw, (fan_in, fan_out), jnp.float32, -bound, bound)
        b = jax.random.uniform(kb, (1, fan_out), jnp.float32, -bound, bound)
        return w, b

    def bn(kg, kb, km, kv, n):
        g = 1.0 + 0.1 * jax.random.normal(kg, (1, n), jnp.float32)
        be = 0.1 * jax.random.normal(kb, (1, n), jnp.float32)
        m = 0.05 * jax.random.normal(km, (1, n), jnp.float32)
        v = 1.0 + 0.1 * jax.random.uniform(kv, (1, n), jnp.float32)
        return g, be, m, v

    w1, b1 = lin(ks[0], ks[1], input_size, hidden_size)
    w2, b2 = lin(ks[2], ks[3], hidden_size, hidden_size)
    w3, b3 = lin(ks[4], ks[5], hidden_size, input_size)
    g1, be1, m1, v1 = bn(ks[6], ks[7], ks[8], ks[9], hidden_size)
    g2, be2, m2, v2 = bn(ks[10], ks[11], ks[12], ks[13], hidden_size)

    return dict(eps=1e-5,
                w1=w1, b1=b1, w2=w2, b2=b2, w3=w3, b3=b3,
                g1=g1, be1=be1, m1=m1, v1=v1,
                g2=g2, be2=be2, m2=m2, v2=v2)


def reference_forward(x, raw):
    """Pure-JAX reference of the eval-mode forward (un-folded, un-packed)."""
    eps = raw["eps"]

    def bn(h, g, be, m, v):
        return (h - m) / jnp.sqrt(v + eps) * g + be

    h = jnp.maximum(x @ raw["w1"] + raw["b1"], 0.0)
    h = bn(h, raw["g1"], raw["be1"], raw["m1"], raw["v1"])
    h = jnp.maximum(h @ raw["w2"] + raw["b2"], 0.0)
    h = bn(h, raw["g2"], raw["be2"], raw["m2"], raw["v2"])
    return h @ raw["w3"] + raw["b3"]


# TODO(synk): training path (train_model/MSELoss/Adam, dropout & BN batch-stat
# updates) is host-side PyTorch machinery and is intentionally not ported.

if __name__ == "__main__":
    INPUT_SIZE = 16      # channel-estimation feature vector length
    HIDDEN = 32
    BATCH = 200          # deliberately not a multiple of pack*tile -> exercises padding

    key = jax.random.PRNGKey(0)
    kx, kp = jax.random.split(key)
    x = jax.random.normal(kx, (BATCH, INPUT_SIZE), jnp.float32)
    raw = init_params(kp, INPUT_SIZE, HIDDEN)
    ref = reference_forward(x, raw)

    # f32 path (small block_rows so the test exercises a multi-step batch grid).
    pp_f32 = fold_and_pack_params(raw, compute_dtype=jnp.float32)
    out = dl_channel_estimator_forward(x, pp_f32, block_rows=16)
    out = jax.block_until_ready(out)
    assert out.shape == (BATCH, INPUT_SIZE)
    assert jnp.allclose(out, ref, atol=1e-4, rtol=1e-4), "f32 kernel mismatch vs reference"

    # bf16-operand path (MXU bf16, f32 accumulate + f32 epilogue) for v6e/v7x.
    pp_bf16 = fold_and_pack_params(raw, compute_dtype=jnp.bfloat16)
    out_bf16 = dl_channel_estimator_forward(x, pp_bf16, block_rows=16)
    out_bf16 = jax.block_until_ready(out_bf16)
    assert jnp.allclose(out_bf16, ref, atol=0.1, rtol=0.1), "bf16 kernel mismatch vs reference"

    print("KERNEL_OK")
</pallas_src>

<mosaic_0001>
module attributes {stable_mosaic.version = 11 : i64} {
  func.func @mlp_kernel(%arg0: i32, %arg1: memref<16x128xf32, #tpu.memory_space<vmem>>, %arg2: memref<128x256xf32, #tpu.memory_space<vmem>>, %arg3: memref<1x256xf32, #tpu.memory_space<vmem>>, %arg4: memref<256x256xf32, #tpu.memory_space<vmem>>, %arg5: memref<1x256xf32, #tpu.memory_space<vmem>>, %arg6: memref<256x128xf32, #tpu.memory_space<vmem>>, %arg7: memref<1x128xf32, #tpu.memory_space<vmem>>, %arg8: memref<16x128xf32, #tpu.memory_space<vmem>>) attributes {dimension_semantics = [#tpu.dimension_semantics<parallel>], iteration_bounds = array<i64: 2>, scalar_prefetch = 0 : i64, scratch_operands = 0 : i64, tpu.core_type = #tpu.core_type<tc>, window_params = [{transform_indices = @transform_0, window_bounds = array<i64: 16, 128>}, {pipeline_mode = #tpu.pipeline_mode<synchronous>, transform_indices = @transform_1, window_bounds = array<i64: 128, 256>}, {pipeline_mode = #tpu.pipeline_mode<synchronous>, transform_indices = @transform_2, window_bounds = array<i64: 1, 256>}, {pipeline_mode = #tpu.pipeline_mode<synchronous>, transform_indices = @transform_3, window_bounds = array<i64: 256, 256>}, {pipeline_mode = #tpu.pipeline_mode<synchronous>, transform_indices = @transform_4, window_bounds = array<i64: 1, 256>}, {pipeline_mode = #tpu.pipeline_mode<synchronous>, transform_indices = @transform_5, window_bounds = array<i64: 256, 128>}, {pipeline_mode = #tpu.pipeline_mode<synchronous>, transform_indices = @transform_6, window_bounds = array<i64: 1, 128>}, {transform_indices = @transform_7, window_bounds = array<i64: 16, 128>}]} {
    %c0 = arith.constant 0 : index
    %c0_0 = arith.constant 0 : index
    %0 = vector.load %arg1[%c0, %c0_0] : memref<16x128xf32, #tpu.memory_space<vmem>>, vector<16x128xf32>
    %c0_1 = arith.constant 0 : index
    %c0_2 = arith.constant 0 : index
    %1 = vector.load %arg2[%c0_1, %c0_2] : memref<128x256xf32, #tpu.memory_space<vmem>>, vector<128x256xf32>
    %cst = arith.constant dense<0.000000e+00> : vector<16x256xf32>
    %2 = tpu.matmul %0, %1, %cst {dimension_numbers = #tpu.dot_dimension_numbers<[1], [0], [0], [1], [0, 0, 1, 1], [], []>} : vector<16x128xf32>, vector<128x256xf32>, vector<16x256xf32> -> vector<16x256xf32>
    %c0_3 = arith.constant 0 : index
    %c0_4 = arith.constant 0 : index
    %3 = vector.load %arg3[%c0_3, %c0_4] : memref<1x256xf32, #tpu.memory_space<vmem>>, vector<1x256xf32>
    %4 = vector.broadcast %3 : vector<1x256xf32> to vector<16x256xf32>
    %5 = arith.addf %2, %4 : vector<16x256xf32>
    %cst_5 = arith.constant 0.000000e+00 : f32
    %6 = vector.broadcast %cst_5 : f32 to vector<16x256xf32>
    %7 = arith.maximumf %5, %6 : vector<16x256xf32>
    %c0_6 = arith.constant 0 : index
    %c0_7 = arith.constant 0 : index
    %8 = vector.load %arg4[%c0_6, %c0_7] : memref<256x256xf32, #tpu.memory_space<vmem>>, vector<256x256xf32>
    %cst_8 = arith.constant dense<0.000000e+00> : vector<16x256xf32>
    %9 = tpu.matmul %7, %8, %cst_8 {dimension_numbers = #tpu.dot_dimension_numbers<[1], [0], [0], [1], [0, 0, 1, 1], [], []>} : vector<16x256xf32>, vector<256x256xf32>, vector<16x256xf32> -> vector<16x256xf32>
    %c0_9 = arith.constant 0 : index
    %c0_10 = arith.constant 0 : index
    %10 = vector.load %arg5[%c0_9, %c0_10] : memref<1x256xf32, #tpu.memory_space<vmem>>, vector<1x256xf32>
    %11 = vector.broadcast %10 : vector<1x256xf32> to vector<16x256xf32>
    %12 = arith.addf %9, %11 : vector<16x256xf32>
    %cst_11 = arith.constant 0.000000e+00 : f32
    %13 = vector.broadcast %cst_11 : f32 to vector<16x256xf32>
    %14 = arith.maximumf %12, %13 : vector<16x256xf32>
    %c0_12 = arith.constant 0 : index
    %c0_13 = arith.constant 0 : index
    %15 = vector.load %arg6[%c0_12, %c0_13] : memref<256x128xf32, #tpu.memory_space<vmem>>, vector<256x128xf32>
    %cst_14 = arith.constant dense<0.000000e+00> : vector<16x128xf32>
    %16 = tpu.matmul %14, %15, %cst_14 {dimension_numbers = #tpu.dot_dimension_numbers<[1], [0], [0], [1], [0, 0, 1, 1], [], []>} : vector<16x256xf32>, vector<256x128xf32>, vector<16x128xf32> -> vector<16x128xf32>
    %c0_15 = arith.constant 0 : index
    %c0_16 = arith.constant 0 : index
    %17 = vector.load %arg7[%c0_15, %c0_16] : memref<1x128xf32, #tpu.memory_space<vmem>>, vector<1x128xf32>
    %18 = vector.broadcast %17 : vector<1x128xf32> to vector<16x128xf32>
    %19 = arith.addf %16, %18 : vector<16x128xf32>
    %c0_17 = arith.constant 0 : index
    %c0_18 = arith.constant 0 : index
    %20 = vector.load %arg8[%c0_17, %c0_18] : memref<16x128xf32, #tpu.memory_space<vmem>>, vector<16x128xf32>
    tpu.vector_store %arg8[%c0_17, %c0_18], %19 {strides = array<i32>} : memref<16x128xf32, #tpu.memory_space<vmem>>, vector<16x128xf32>,
    return
  }
  func.func @transform_0(%arg0: i32) -> (i32, i32) {
    %c0_i32 = arith.constant 0 : i32
    %c0_i32_0 = arith.constant 0 : i32
    return %arg0, %c0_i32 : i32, i32
  }
  func.func @transform_1(%arg0: i32) -> (i32, i32) {
    %c0_i32 = arith.constant 0 : i32
    %c0_i32_0 = arith.constant 0 : i32
    %c0_i32_1 = arith.constant 0 : i32
    return %c0_i32, %c0_i32_0 : i32, i32
  }
  func.func @transform_2(%arg0: i32) -> (i32, i32) {
    %c0_i32 = arith.constant 0 : i32
    %c0_i32_0 = arith.constant 0 : i32
    %c0_i32_1 = arith.constant 0 : i32
    return %c0_i32, %c0_i32_0 : i32, i32
  }
  func.func @transform_3(%arg0: i32) -> (i32, i32) {
    %c0_i32 = arith.constant 0 : i32
    %c0_i32_0 = arith.constant 0 : i32
    %c0_i32_1 = arith.constant 0 : i32
    return %c0_i32, %c0_i32_0 : i32, i32
  }
  func.func @transform_4(%arg0: i32) -> (i32, i32) {
    %c0_i32 = arith.constant 0 : i32
    %c0_i32_0 = arith.constant 0 : i32
    %c0_i32_1 = arith.constant 0 : i32
    return %c0_i32, %c0_i32_0 : i32, i32
  }
  func.func @transform_5(%arg0: i32) -> (i32, i32) {
    %c0_i32 = arith.constant 0 : i32
    %c0_i32_0 = arith.constant 0 : i32
    %c0_i32_1 = arith.constant 0 : i32
    return %c0_i32, %c0_i32_0 : i32, i32
  }
  func.func @transform_6(%arg0: i32) -> (i32, i32) {
    %c0_i32 = arith.constant 0 : i32
    %c0_i32_0 = arith.constant 0 : i32
    %c0_i32_1 = arith.constant 0 : i32
    return %c0_i32, %c0_i32_0 : i32, i32
  }
  func.func @transform_7(%arg0: i32) -> (i32, i32) {
    %c0_i32 = arith.constant 0 : i32
    %c0_i32_0 = arith.constant 0 : i32
    return %arg0, %c0_i32 : i32, i32
  }
}

</mosaic_0001>

<llo_original>
// kernel: tpu_custom_call.1
$region0: #{tpu_custom_call.1}
  #allocation0 [shape = 'u32[]', space=smem, size = 0x4, offset = 0x4, fixed_abs, tag = 'smem constant byte address 0x4 - core index']
  #allocation1 [shape = 'u32[72,128]{1,0:T(1,128)}', space=vmem, size = 0x9000, scoped, tag = 'internal scratch']
  %s0 = inlined_call_operand.hbm [shape: f32[32,128], index: 0, kind: input, shape index: {}]
  %s1 = inlined_call_operand.hbm [shape: f32[128,256], index: 1, kind: input, shape index: {}]
  %s2 = inlined_call_operand.hbm [shape: f32[1,256], index: 2, kind: input, shape index: {}]
  %s3 = inlined_call_operand.hbm [shape: f32[256,256], index: 3, kind: input, shape index: {}]
  %s4 = inlined_call_operand.vmem [shape: f32[1,256], index: 4, kind: input, shape index: {}]
  %s5 = inlined_call_operand.hbm [shape: f32[256,128], index: 5, kind: input, shape index: {}]
  %s6 = inlined_call_operand.vmem [shape: f32[1,128], index: 6, kind: input, shape index: {}]
  %s7 = inlined_call_operand.hbm [shape: f32[32,128], index: 7, kind: output, shape index: {}]
  %s8 = sld [smem:[#allocation0]]
  $region81: #{tpu_custom_call.1} parent=0
    _
  %s10 = ssub.s32 1, %s8
  %s11 = scalar_select 0, %s10, %s8
  $region1: #{tpu_custom_call.1} parent=0
    #allocation2 [shape = 'u8[16384]{0}', space=vmem, size = 0x4000, scoped, tag = 'input window, operand 0']
    #allocation3 [shape = 's32[2]{0}', space=sflag, size = 0x8, scoped, tag = 'scoped memory for tpu_custom_call.1']
    #allocation4 [shape = 's32[2]{0}', space=sflag, size = 0x8, scoped, tag = 'scoped memory for tpu_custom_call.1']
    #allocation5 [shape = 'u8[131072]{0}', space=vmem, size = 0x20000, scoped, tag = 'input window, operand 1, single buffered']
    #allocation6 [shape = 's32[1]{0}', space=sflag, size = 0x4, scoped, tag = 'scoped memory for tpu_custom_call.1']
    #allocation7 [shape = 'u8[1024]{0}', space=vmem, size = 0x400, scoped, tag = 'input window, operand 2, single buffered']
    #allocation8 [shape = 'u8[262144]{0}', space=vmem, size = 0x40000, scoped, tag = 'input window, operand 3, single buffered']
    #allocation9 [shape = 's32[1]{0}', space=sflag, size = 0x4, scoped, tag = 'scoped memory for tpu_custom_call.1']
    #allocation10 [shape = 'u8[131072]{0}', space=vmem, size = 0x20000, scoped, tag = 'input window, operand 5, single buffered']
    #allocation11 [shape = 'u8[16384]{0}', space=vmem, size = 0x4000, scoped, tag = 'output window, operand 0']
    %12 = vsyncpa [#allocation3], 0
    %s13 = scalar_lea.sflag [#allocation3], 1
    %14 = vsyncpa %s13, 0
    %15 = vsyncpa [#allocation6], 0
    %16 = vsyncpa [#allocation9], 0
    %17 = vsyncpa [#allocation4], 0
    %s18 = scalar_lea.sflag [#allocation4], 1
    %19 = vsyncpa %s18, 0
    loop: start=0, step=1, limit=4
    $region2: #{tpu_custom_call.1} parent=1 // loop_pre_header
      _
    $region3: #{tpu_custom_call.1} parent=1 // loop_header
      %s21 = sphi 0, %s25
      %p22 = scmp.ge.s32.totalorder %s21, 4
      %s31 = sphi 0, %s33
      %s34 = sphi 0, %s31
      %s35 = sphi 0, %s34
      %s51 = sphi 0, %s35
      %s55 = sphi 0, %s55
      %s57 = sphi 0, %s55
      %s58 = sphi 0, %s57
      %s72 = sphi 0, %s58
      %s76 = sphi 0, %s76
      %s78 = sphi 0, %s76
      %s79 = sphi 0, %s78
      %s93 = sphi 0, %s79
      %s97 = sphi 0, %s97
      %s99 = sphi 0, %s97
      %s100 = sphi 0, %s99
      %s114 = sphi 0, %s100
      %s118 = sphi 0, %s118
      %s120 = sphi 0, %s118
      %s121 = sphi 0, %s120
      %s135 = sphi 0, %s121
      %s139 = sphi 0, %s139
      %s141 = sphi 0, %s139
      %s142 = sphi 0, %s141
      %s156 = sphi 0, %s142
      %s160 = sphi 0, %s160
      %s162 = sphi 0, %s160
      %s163 = sphi 0, %s162
      %s177 = sphi 0, %s163
      %s183 = sphi 0, %s185
      %s186 = sphi 0, %s183
      %s187 = sphi 0, %s186
      %s203 = sphi 0, %s187
    $region4: #{tpu_custom_call.1} parent=1 // loop_header_branch
      %24 = sbr.rel (%p22) target = $region8
    $region5: #{tpu_custom_call.1} parent=1 // loop_body
      %s26 = ssub.s32 %s21, 1
      %s27 = ssub.s32 %s21, 2
      %s28 = sadd.s32 %s21, 1
      %s29 = ssub.s32 %s21, %s28
      %p30 = scmp.eq.s32.totalorder %s29, 0
      %s32 = sadd.s32 %s31, 1
      %s33 = scalar_select %p30, %s31, %s32
      %p36 = pneg %p30
      %p37 = scmp.eq.s32.totalorder %s21, 1
      %p38 = por %p36, %p37
      %p39 = scmp.ne.s32.totalorder %s31, %s34
      %p40 = scmp.eq.s32.totalorder %s21, 0
      %p41 = por %p39, %p40
      %p42 = scmp.ne.s32.totalorder %s31, %s34
      %p43 = scmp.eq.s32.totalorder %s26, 1
      %p44 = por %p42, %p43
      %p45 = scmp.ne.s32.totalorder %s34, %s35
      %p46 = scmp.eq.s32.totalorder %s26, 0
      %p47 = por %p45, %p46
      %p48 = scmp.ne.s32.totalorder %s34, %s35
      %p49 = scmp.eq.s32.totalorder %s27, 1
      %p50 = por %p48, %p49
      %p52 = scmp.ne.s32.totalorder %s35, %s51
      %p53 = scmp.eq.s32.totalorder %s27, 0
      %p54 = por %p52, %p53
      %s56 = sadd.s32 %s55, 1
      %p59 = scmp.eq.s32.totalorder %s21, 1
      %p60 = scmp.ne.s32.totalorder %s55, %s57
      %p61 = scmp.eq.s32.totalorder %s21, 0
      %p62 = por %p60, %p61
      %p63 = scmp.ne.s32.totalorder %s55, %s57
      %p64 = scmp.eq.s32.totalorder %s26, 1
      %p65 = por %p63, %p64
      %p66 = scmp.ne.s32.totalorder %s57, %s58
      %p67 = scmp.eq.s32.totalorder %s26, 0
      %p68 = por %p66, %p67
      %p69 = scmp.ne.s32.totalorder %s57, %s58
      %p70 = scmp.eq.s32.totalorder %s27, 1
      %p71 = por %p69, %p70
      %p73 = scmp.ne.s32.totalorder %s58, %s72
      %p74 = scmp.eq.s32.totalorder %s27, 0
      %p75 = por %p73, %p74
      %s77 = sadd.s32 %s76, 1
      %p80 = scmp.eq.s32.totalorder %s21, 1
      %p81 = scmp.ne.s32.totalorder %s76, %s78
      %p82 = scmp.eq.s32.totalorder %s21, 0
      %p83 = por %p81, %p82
      %p84 = scmp.ne.s32.totalorder %s76, %s78
      %p85 = scmp.eq.s32.totalorder %s26, 1
      %p86 = por %p84, %p85
      %p87 = scmp.ne.s32.totalorder %s78, %s79
      %p88 = scmp.eq.s32.totalorder %s26, 0
      %p89 = por %p87, %p88
      %p90 = scmp.ne.s32.totalorder %s78, %s79
      %p91 = scmp.eq.s32.totalorder %s27, 1
      %p92 = por %p90, %p91
      %p94 = scmp.ne.s32.totalorder %s79, %s93
      %p95 = scmp.eq.s32.totalorder %s27, 0
      %p96 = por %p94, %p95
      %s98 = sadd.s32 %s97, 1
      %p101 = scmp.eq.s32.totalorder %s21, 1
      %p102 = scmp.ne.s32.totalorder %s97, %s99
      %p103 = scmp.eq.s32.totalorder %s21, 0
      %p104 = por %p102, %p103
      %p105 = scmp.ne.s32.totalorder %s97, %s99
      %p106 = scmp.eq.s32.totalorder %s26, 1
      %p107 = por %p105, %p106
      %p108 = scmp.ne.s32.totalorder %s99, %s100
      %p109 = scmp.eq.s32.totalorder %s26, 0
      %p110 = por %p108, %p109
      %p111 = scmp.ne.s32.totalorder %s99, %s100
      %p112 = scmp.eq.s32.totalorder %s27, 1
      %p113 = por %p111, %p112
      %p115 = scmp.ne.s32.totalorder %s100, %s114
      %p116 = scmp.eq.s32.totalorder %s27, 0
      %p117 = por %p115, %p116
      %s119 = sadd.s32 %s118, 1
      %p122 = scmp.eq.s32.totalorder %s21, 1
      %p123 = scmp.ne.s32.totalorder %s118, %s120
      %p124 = scmp.eq.s32.totalorder %s21, 0
      %p125 = por %p123, %p124
      %p126 = scmp.ne.s32.totalorder %s118, %s120
      %p127 = scmp.eq.s32.totalorder %s26, 1
      %p128 = por %p126, %p127
      %p129 = scmp.ne.s32.totalorder %s120, %s121
      %p130 = scmp.eq.s32.totalorder %s26, 0
      %p131 = por %p129, %p130
      %p132 = scmp.ne.s32.totalorder %s120, %s121
      %p133 = scmp.eq.s32.totalorder %s27, 1
      %p134 = por %p132, %p133
      %p136 = scmp.ne.s32.totalorder %s121, %s135
      %p137 = scmp.eq.s32.totalorder %s27, 0
      %p138 = por %p136, %p137
      %s140 = sadd.s32 %s139, 1
      %p143 = scmp.eq.s32.totalorder %s21, 1
      %p144 = scmp.ne.s32.totalorder %s139, %s141
      %p145 = scmp.eq.s32.totalorder %s21, 0
      %p146 = por %p144, %p145
      %p147 = scmp.ne.s32.totalorder %s139, %s141
      %p148 = scmp.eq.s32.totalorder %s26, 1
      %p149 = por %p147, %p148
      %p150 = scmp.ne.s32.totalorder %s141, %s142
      %p151 = scmp.eq.s32.totalorder %s26, 0
      %p152 = por %p150, %p151
      %p153 = scmp.ne.s32.totalorder %s141, %s142
      %p154 = scmp.eq.s32.totalorder %s27, 1
      %p155 = por %p153, %p154
      %p157 = scmp.ne.s32.totalorder %s142, %s156
      %p158 = scmp.eq.s32.totalorder %s27, 0
      %p159 = por %p157, %p158
      %s161 = sadd.s32 %s160, 1
      %p164 = scmp.eq.s32.totalorder %s21, 1
      %p165 = scmp.ne.s32.totalorder %s160, %s162
      %p166 = scmp.eq.s32.totalorder %s21, 0
      %p167 = por %p165, %p166
      %p168 = scmp.ne.s32.totalorder %s160, %s162
      %p169 = scmp.eq.s32.totalorder %s26, 1
      %p170 = por %p168, %p169
      %p171 = scmp.ne.s32.totalorder %s162, %s163
      %p172 = scmp.eq.s32.totalorder %s26, 0
      %p173 = por %p171, %p172
      %p174 = scmp.ne.s32.totalorder %s162, %s163
      %p175 = scmp.eq.s32.totalorder %s27, 1
      %p176 = por %p174, %p175
      %p178 = scmp.ne.s32.totalorder %s163, %s177
      %p179 = scmp.eq.s32.totalorder %s27, 0
      %p180 = por %p178, %p179
      %s181 = ssub.s32 %s21, %s28
      %p182 = scmp.eq.s32.totalorder %s181, 0
      %s184 = sadd.s32 %s183, 1
      %s185 = scalar_select %p182, %s183, %s184
      %p188 = pneg %p182
      %p189 = scmp.eq.s32.totalorder %s21, 1
      %p190 = por %p188, %p189
      %p191 = scmp.ne.s32.totalorder %s183, %s186
      %p192 = scmp.eq.s32.totalorder %s21, 0
      %p193 = por %p191, %p192
      %p194 = scmp.ne.s32.totalorder %s183, %s186
      %p195 = scmp.eq.s32.totalorder %s26, 1
      %p196 = por %p194, %p195
      %p197 = scmp.ne.s32.totalorder %s186, %s187
      %p198 = scmp.eq.s32.totalorder %s26, 0
      %p199 = por %p197, %p198
      %p200 = scmp.ne.s32.totalorder %s186, %s187
      %p201 = scmp.eq.s32.totalorder %s27, 1
      %p202 = por %p200, %p201
      %p204 = scmp.ne.s32.totalorder %s187, %s203
      %p205 = scmp.eq.s32.totalorder %s27, 0
      %p206 = por %p204, %p205
      %p207 = scmp.le.s32.totalorder 1, %s21
      %p208 = scmp.lt.s32.totalorder %s21, 3
      %p209 = pnand %p207, %p208
      %p210 = pneg %p209
      // Predicated region
      $region9: #{tpu_custom_call.1} parent=5 // pred_check
        _
      $region10: #{tpu_custom_call.1} parent=5 // pred_check_branch
        %212 = sbr.rel (%p209) target = $region12
      $region11: #{tpu_custom_call.1} parent=5 // pred_region
        %s213 = ssub.s32 %s21, 1
        // Predicated region
        $region13: #{tpu_custom_call.1} parent=11 // pred_check
          %p214 = pneg %p68
        $region14: #{tpu_custom_call.1} parent=11 // pred_check_branch
          %216 = sbr.rel (%p214) target = $region16
        $region15: #{tpu_custom_call.1} parent=11 // pred_region
          %218 = vsyncadd [#allocation6], 0
          %s219 = sshll.u32 %s1, 4
          %s220 = int_to_ptr.hbm [resolvable:$true] %s219
          %s221 = sshll.u32 [#allocation5], 4
          %s222 = int_to_ptr.vmem [resolvable:$true] %s221
          %227 = dma.hbm_to_vmem [thread:$0]  %s220, 4096, %s222, [#allocation6], 256, 256, 16
        $region16: #{tpu_custom_call.1} parent=11 // pred_fallthru
          _
        // Predicated region
        $region17: #{tpu_custom_call.1} parent=11 // pred_check
          %p228 = pneg %p89
        $region18: #{tpu_custom_call.1} parent=11 // pred_check_branch
          %230 = sbr.rel (%p228) target = $region20
        $region19: #{tpu_custom_call.1} parent=11 // pred_region
          %232 = vsyncadd [#allocation6], 0
          %s234 = sshll.u32 %s2, 4
          %s235 = int_to_ptr.hbm [resolvable:$true] %s234
          %s236 = sshll.u32 [#allocation7], 4
          %s237 = int_to_ptr.vmem [resolvable:$true] %s236
          %239 = dma.hbm_to_vmem [thread:$0]  %s235, 32, %s237, [#allocation6]
        $region20: #{tpu_custom_call.1} parent=11 // pred_fallthru
          _
        // Predicated region
        $region21: #{tpu_custom_call.1} parent=11 // pred_check
          %p240 = pneg %p110
        $region22: #{tpu_custom_call.1} parent=11 // pred_check_branch
          %242 = sbr.rel (%p240) target = $region24
        $region23: #{tpu_custom_call.1} parent=11 // pred_region
          %244 = vsyncadd [#allocation9], 0
          %s245 = sshll.u32 %s3, 4
          %s246 = int_to_ptr.hbm [resolvable:$true] %s245
          %s247 = sshll.u32 [#allocation8], 4
          %s248 = int_to_ptr.vmem [resolvable:$true] %s247
          %253 = dma.hbm_to_vmem [thread:$0]  %s246, 8192, %s248, [#allocation9], 256, 256, 16
        $region24: #{tpu_custom_call.1} parent=11 // pred_fallthru
          _
        // Predicated region
        $region25: #{tpu_custom_call.1} parent=11 // pred_check
          %p254 = pneg %p131
        $region26: #{tpu_custom_call.1} parent=11 // pred_check_branch
          %256 = sbr.rel (%p254) target = $region28
        $region27: #{tpu_custom_call.1} parent=11 // pred_region
          _
        $region28: #{tpu_custom_call.1} parent=11 // pred_fallthru
          _
        // Predicated region
        $region29: #{tpu_custom_call.1} parent=11 // pred_check
          %p257 = pneg %p152
        $region30: #{tpu_custom_call.1} parent=11 // pred_check_branch
          %259 = sbr.rel (%p257) target = $region32
        $region31: #{tpu_custom_call.1} parent=11 // pred_region
          %261 = vsyncadd [#allocation9], 0
          %s262 = sshll.u32 %s5, 4
          %s263 = int_to_ptr.hbm [resolvable:$true] %s262
          %s264 = sshll.u32 [#allocation10], 4
          %s265 = int_to_ptr.vmem [resolvable:$true] %s264
          %270 = dma.hbm_to_vmem [thread:$0]  %s263, 4096, %s265, [#allocation9], 128, 128, 8
        $region32: #{tpu_custom_call.1} parent=11 // pred_fallthru
          _
        // Predicated region
        $region33: #{tpu_custom_call.1} parent=11 // pred_check
          %p271 = pneg %p173
        $region34: #{tpu_custom_call.1} parent=11 // pred_check_branch
          %273 = sbr.rel (%p271) target = $region36
        $region35: #{tpu_custom_call.1} parent=11 // pred_region
          _
        $region36: #{tpu_custom_call.1} parent=11 // pred_fallthru
          _
      $region12: #{tpu_custom_call.1} parent=5 // pred_fallthru
        _
      %p274 = scmp.lt.s32.totalorder %s21, 2
      // Predicated region
      $region37: #{tpu_custom_call.1} parent=5 // pred_check
        %p275 = pneg %p274
      $region38: #{tpu_custom_call.1} parent=5 // pred_check_branch
        %277 = sbr.rel (%p275) target = $region40
      $region39: #{tpu_custom_call.1} parent=5 // pred_region
        // Predicated region
        $region41: #{tpu_custom_call.1} parent=39 // pred_check
          %p278 = pneg %p41
        $region42: #{tpu_custom_call.1} parent=39 // pred_check_branch
          %280 = sbr.rel (%p278) target = $region44
        $region43: #{tpu_custom_call.1} parent=39 // pred_region
          %s281 = sand.u32 %s31, 1
          %s282 = scalar_lea.sflag [#allocation3], %s281
          %s283 = sand.u32 %s31, 1
          %s284 = smul.addr %s283, 16
          %s285 = scalar_lea.vmem [#allocation2], %s284
          %s286 = smul.u32 2, %s21
          %288 = vsyncadd %s282, 0
          %s289 = smul.addr %s286, 8
          %s290 = scalar_lea.hbm %s0, %s289
          %s291 = sshll.u32 %s290, 4
          %s292 = int_to_ptr.hbm [resolvable:$true] %s291
          %s293 = sshll.u32 %s285, 4
          %s294 = int_to_ptr.vmem [resolvable:$true] %s293
          %299 = dma.hbm_to_vmem [thread:$0]  %s292, 256, %s294, %s282, 128, 128, 8
        $region44: #{tpu_custom_call.1} parent=39 // pred_fallthru
          _
      $region40: #{tpu_custom_call.1} parent=5 // pred_fallthru
        _
      %p300 = scmp.le.s32.totalorder 1, %s21
      %p301 = scmp.lt.s32.totalorder %s21, 3
      %p302 = pnand %p300, %p301
      %p303 = pneg %p302
      // Predicated region
      $region45: #{tpu_custom_call.1} parent=5 // pred_check
        _
      $region46: #{tpu_custom_call.1} parent=5 // pred_check_branch
        %305 = sbr.rel (%p302) target = $region48
      $region47: #{tpu_custom_call.1} parent=5 // pred_region
        %s306 = ssub.s32 %s21, 1
        %s307 = sand.u32 %s34, 1
        %s308 = scalar_lea.sflag [#allocation3], %s307
        %s309 = sand.u32 %s34, 1
        %s310 = smul.addr %s309, 16
        %s311 = scalar_lea.vmem [#allocation2], %s310
        // Predicated region
        $region49: #{tpu_custom_call.1} parent=47 // pred_check
          %p312 = pneg %p47
        $region50: #{tpu_custom_call.1} parent=47 // pred_check_branch
          %314 = sbr.rel (%p312) target = $region52
        $region51: #{tpu_custom_call.1} parent=47 // pred_region
          %316 = dma.done %s308, 256
        $region52: #{tpu_custom_call.1} parent=47 // pred_fallthru
          _
        // Predicated region
        $region53: #{tpu_custom_call.1} parent=47 // pred_check
          %p317 = pneg %p68
        $region54: #{tpu_custom_call.1} parent=47 // pred_check_branch
          %319 = sbr.rel (%p317) target = $region56
        $region55: #{tpu_custom_call.1} parent=47 // pred_region
          %321 = dma.done [#allocation6], 4096
        $region56: #{tpu_custom_call.1} parent=47 // pred_fallthru
          _
        // Predicated region
        $region57: #{tpu_custom_call.1} parent=47 // pred_check
          %p322 = pneg %p89
        $region58: #{tpu_custom_call.1} parent=47 // pred_check_branch
          %324 = sbr.rel (%p322) target = $region60
        $region59: #{tpu_custom_call.1} parent=47 // pred_region
          %326 = dma.done [#allocation6], 32
        $region60: #{tpu_custom_call.1} parent=47 // pred_fallthru
          _
        // Predicated region
        $region61: #{tpu_custom_call.1} parent=47 // pred_check
          %p327 = pneg %p110
        $region62: #{tpu_custom_call.1} parent=47 // pred_check_branch
          %329 = sbr.rel (%p327) target = $region64
        $region63: #{tpu_custom_call.1} parent=47 // pred_region
          %331 = dma.done [#allocation9], 8192
        $region64: #{tpu_custom_call.1} parent=47 // pred_fallthru
          _
        // Predicated region
        $region65: #{tpu_custom_call.1} parent=47 // pred_check
          %p332 = pneg %p152
        $region66: #{tpu_custom_call.1} parent=47 // pred_check_branch
          %334 = sbr.rel (%p332) target = $region68
        $region67: #{tpu_custom_call.1} parent=47 // pred_region
          %336 = dma.done [#allocation9], 4096
        $region68: #{tpu_custom_call.1} parent=47 // pred_fallthru
          _
        %s337 = sand.u32 %s34, 1
        %s338 = scalar_lea.sflag [#allocation3], %s337
        %s339 = sand.u32 %s34, 1
        %s340 = smul.addr %s339, 16
        %s341 = scalar_lea.vmem [#allocation2], %s340
        %p342 = pneg %p47
        %p343 = pneg %p44
        %p344 = pneg %p68
        %p345 = pneg %p65
        %p346 = pneg %p89
        %p347 = pneg %p86
        %p348 = pneg %p110
        %p349 = pneg %p107
        %p350 = pneg %p131
        %p351 = pneg %p128
        %p352 = pneg %p152
        %p353 = pneg %p149
        %p354 = pneg %p173
        %p355 = pneg %p170
        %p356 = pneg %p199
        %p357 = pneg %p196
        %s358 = sand.u32 %s186, 1
        %s359 = scalar_lea.sflag [#allocation4], %s358
        %s360 = sand.u32 %s186, 1
        %s361 = smul.addr %s360, 16
        %s362 = scalar_lea.vmem [#allocation11], %s361
        %s363 = smul.u32 2, %s26
        %s364 = smul.u32 2, %s26
        %v365 = vld [vmem:[%s311] sm:$0xff]
        %v366 = vld [vmem:[%s311 + $0x8] sm:$0xff]
        %v367 = vld [vmem:[#allocation5] sm:$0xff]
        %v368 = vld [vmem:[#allocation5 + $0x8] sm:$0xff]
        %v369 = vld [vmem:[#allocation5 + $0x10] sm:$0xff]
        %v370 = vld [vmem:[#allocation5 + $0x18] sm:$0xff]
        %v371 = vld [vmem:[#allocation5 + $0x20] sm:$0xff]
        %v372 = vld [vmem:[#allocation5 + $0x28] sm:$0xff]
        %v373 = vld [vmem:[#allocation5 + $0x30] sm:$0xff]
        %v374 = vld [vmem:[#allocation5 + $0x38] sm:$0xff]
        %v375 = vld [vmem:[#allocation5 + $0x40] sm:$0xff]
        %v376 = vld [vmem:[#allocation5 + $0x48] sm:$0xff]
        %v377 = vld [vmem:[#allocation5 + $0x50] sm:$0xff]
        %v378 = vld [vmem:[#allocation5 + $0x58] sm:$0xff]
        %v379 = vld [vmem:[#allocation5 + $0x60] sm:$0xff]
        %v380 = vld [vmem:[#allocation5 + $0x68] sm:$0xff]
        %v381 = vld [vmem:[#allocation5 + $0x70] sm:$0xff]
        %v382 = vld [vmem:[#allocation5 + $0x78] sm:$0xff]
        %v383 = vld [vmem:[#allocation5 + $0x80] sm:$0xff]
        %v384 = vld [vmem:[#allocation5 + $0x88] sm:$0xff]
        %v385 = vld [vmem:[#allocation5 + $0x90] sm:$0xff]
        %v386 = vld [vmem:[#allocation5 + $0x98] sm:$0xff]
        %v387 = vld [vmem:[#allocation5 + $0xa0] sm:$0xff]
        %v388 = vld [vmem:[#allocation5 + $0xa8] sm:$0xff]
        %v389 = vld [vmem:[#allocation5 + $0xb0] sm:$0xff]
        %v390 = vld [vmem:[#allocation5 + $0xb8] sm:$0xff]
        %v391 = vld [vmem:[#allocation5 + $0xc0] sm:$0xff]
        %v392 = vld [vmem:[#allocation5 + $0xc8] sm:$0xff]
        %v393 = vld [vmem:[#allocation5 + $0xd0] sm:$0xff]
        %v394 = vld [vmem:[#allocation5 + $0xd8] sm:$0xff]
        %v395 = vld [vmem:[#allocation5 + $0xe0] sm:$0xff]
        %v396 = vld [vmem:[#allocation5 + $0xe8] sm:$0xff]
        %v397 = vld [vmem:[#allocation5 + $0xf0] sm:$0xff]
        %v398 = vld [vmem:[#allocation5 + $0xf8] sm:$0xff]
        %v399 = vld [vmem:[#allocation7] sm:$0x3]
        %v401 = vperm.slane %v399, 0
        %v402 = vperm.slane %v399, 1
        %405 = vmatpush.msra.mxu0 %v397
        %406 = vmatpush.msra.mxu0 %v395
        %407 = vmatpush.msra.mxu0 %v393
        %408 = vmatpush.msra.mxu0 %v391
        %409 = vmatpush.msra.mxu0 %v389
        %410 = vmatpush.msra.mxu0 %v387
        %411 = vmatpush.msra.mxu0 %v385
        %412 = vmatpush.msra.mxu0 %v383
        %413 = vmatpush.msra.mxu0 %v381
        %414 = vmatpush.msra.mxu0 %v379
        %415 = vmatpush.msra.mxu0 %v377
        %416 = vmatpush.msra.mxu0 %v375
        %417 = vmatpush.msra.mxu0 %v373
        %418 = vmatpush.msra.mxu0 %v371
        %419 = vmatpush.msra.mxu0 %v369
        %420 = vmatpush.msra.mxu0 %v367
        %421 = vmatmul.f32.gmra.mxu0 %v365
        %v422 = vpop.f32.mrf.mxu0
        %v423 = vadd.f32 %v401, %v422
        %424 = vmatmul.f32.gmra.mxu0 %v366
        %v425 = vpop.f32.mrf.mxu0
        %v426 = vadd.f32 %v401, %v425
        %427 = vdwg.mxu0
        %428 = vmatpush.msra.mxu0 %v398
        %429 = vmatpush.msra.mxu0 %v396
        %430 = vmatpush.msra.mxu0 %v394
        %431 = vmatpush.msra.mxu0 %v392
        %432 = vmatpush.msra.mxu0 %v390
        %433 = vmatpush.msra.mxu0 %v388
        %434 = vmatpush.msra.mxu0 %v386
        %435 = vmatpush.msra.mxu0 %v384
        %436 = vmatpush.msra.mxu0 %v382
        %437 = vmatpush.msra.mxu0 %v380
        %438 = vmatpush.msra.mxu0 %v378
        %439 = vmatpush.msra.mxu0 %v376
        %440 = vmatpush.msra.mxu0 %v374
        %441 = vmatpush.msra.mxu0 %v372
        %442 = vmatpush.msra.mxu0 %v370
        %443 = vmatpush.msra.mxu0 %v368
        %444 = vmatmul.f32.gmra.mxu0 %v365
        %v445 = vpop.f32.mrf.mxu0
        %v446 = vadd.f32 %v402, %v445
        %447 = vmatmul.f32.gmra.mxu0 %v366
        %v448 = vpop.f32.mrf.mxu0
        %v449 = vadd.f32 %v402, %v448
        %450 = vdwg.mxu0
        %v451 = vmax.f32 %v423, 0.0
        %v452 = vmax.f32 %v446, 0.0
        %v453 = vmax.f32 %v426, 0.0
        %v454 = vmax.f32 %v449, 0.0
        %v455 = vld [vmem:[#allocation8] sm:$0xff]
        %v456 = vld [vmem:[#allocation8 + $0x8] sm:$0xff]
        %v457 = vld [vmem:[#allocation8 + $0x10] sm:$0xff]
        %v458 = vld [vmem:[#allocation8 + $0x18] sm:$0xff]
        %v459 = vld [vmem:[#allocation8 + $0x20] sm:$0xff]
        %v460 = vld [vmem:[#allocation8 + $0x28] sm:$0xff]
        %v461 = vld [vmem:[#allocation8 + $0x30] sm:$0xff]
        %v462 = vld [vmem:[#allocation8 + $0x38] sm:$0xff]
        %v463 = vld [vmem:[#allocation8 + $0x40] sm:$0xff]
        %v464 = vld [vmem:[#allocation8 + $0x48] sm:$0xff]
        %v465 = vld [vmem:[#allocation8 + $0x50] sm:$0xff]
        %v466 = vld [vmem:[#allocation8 + $0x58] sm:$0xff]
        %v467 = vld [vmem:[#allocation8 + $0x60] sm:$0xff]
        %v468 = vld [vmem:[#allocation8 + $0x68] sm:$0xff]
        %v469 = vld [vmem:[#allocation8 + $0x70] sm:$0xff]
        %v470 = vld [vmem:[#allocation8 + $0x78] sm:$0xff]
        %v471 = vld [vmem:[#allocation8 + $0x80] sm:$0xff]
        %v472 = vld [vmem:[#allocation8 + $0x88] sm:$0xff]
        %v473 = vld [vmem:[#allocation8 + $0x90] sm:$0xff]
        %v474 = vld [vmem:[#allocation8 + $0x98] sm:$0xff]
        %v475 = vld [vmem:[#allocation8 + $0xa0] sm:$0xff]
        %v476 = vld [vmem:[#allocation8 + $0xa8] sm:$0xff]
        %v477 = vld [vmem:[#allocation8 + $0xb0] sm:$0xff]
        %v478 = vld [vmem:[#allocation8 + $0xb8] sm:$0xff]
        %v479 = vld [vmem:[#allocation8 + $0xc0] sm:$0xff]
        %v480 = vld [vmem:[#allocation8 + $0xc8] sm:$0xff]
        %v481 = vld [vmem:[#allocation8 + $0xd0] sm:$0xff]
        %v482 = vld [vmem:[#allocation8 + $0xd8] sm:$0xff]
        %v483 = vld [vmem:[#allocation8 + $0xe0] sm:$0xff]
        %v484 = vld [vmem:[#allocation8 + $0xe8] sm:$0xff]
        %v485 = vld [vmem:[#allocation8 + $0xf0] sm:$0xff]
        %v486 = vld [vmem:[#allocation8 + $0xf8] sm:$0xff]
        %v487 = vld [vmem:[#allocation8 + $0x100] sm:$0xff]
        %v488 = vld [vmem:[#allocation8 + $0x108] sm:$0xff]
        %v489 = vld [vmem:[#allocation8 + $0x110] sm:$0xff]
        %v490 = vld [vmem:[#allocation8 + $0x118] sm:$0xff]
        %v491 = vld [vmem:[#allocation8 + $0x120] sm:$0xff]
        %v492 = vld [vmem:[#allocation8 + $0x128] sm:$0xff]
        %v493 = vld [vmem:[#allocation8 + $0x130] sm:$0xff]
        %v494 = vld [vmem:[#allocation8 + $0x138] sm:$0xff]
        %v495 = vld [vmem:[#allocation8 + $0x140] sm:$0xff]
        %v496 = vld [vmem:[#allocation8 + $0x148] sm:$0xff]
        %v497 = vld [vmem:[#allocation8 + $0x150] sm:$0xff]
        %v498 = vld [vmem:[#allocation8 + $0x158] sm:$0xff]
        %v499 = vld [vmem:[#allocation8 + $0x160] sm:$0xff]
        %v500 = vld [vmem:[#allocation8 + $0x168] sm:$0xff]
        %v501 = vld [vmem:[#allocation8 + $0x170] sm:$0xff]
        %v502 = vld [vmem:[#allocation8 + $0x178] sm:$0xff]
        %v503 = vld [vmem:[#allocation8 + $0x180] sm:$0xff]
        %v504 = vld [vmem:[#allocation8 + $0x188] sm:$0xff]
        %v505 = vld [vmem:[#allocation8 + $0x190] sm:$0xff]
        %v506 = vld [vmem:[#allocation8 + $0x198] sm:$0xff]
        %v507 = vld [vmem:[#allocation8 + $0x1a0] sm:$0xff]
        %v508 = vld [vmem:[#allocation8 + $0x1a8] sm:$0xff]
        %v509 = vld [vmem:[#allocation8 + $0x1b0] sm:$0xff]
        %v510 = vld [vmem:[#allocation8 + $0x1b8] sm:$0xff]
        %v511 = vld [vmem:[#allocation8 + $0x1c0] sm:$0xff]
        %v512 = vld [vmem:[#allocation8 + $0x1c8] sm:$0xff]
        %v513 = vld [vmem:[#allocation8 + $0x1d0] sm:$0xff]
        %v514 = vld [vmem:[#allocation8 + $0x1d8] sm:$0xff]
        %v515 = vld [vmem:[#allocation8 + $0x1e0] sm:$0xff]
        %v516 = vld [vmem:[#allocation8 + $0x1e8] sm:$0xff]
        %v517 = vld [vmem:[#allocation8 + $0x1f0] sm:$0xff]
        %v518 = vld [vmem:[#allocation8 + $0x1f8] sm:$0xff]
        %v519 = vld [vmem:[%s4] sm:$0x3]
        %v521 = vperm.slane %v519, 0
        %v522 = vperm.slane %v519, 1
        %525 = vmatpush.msra.mxu0 %v485
        %526 = vmatpush.msra.mxu0 %v483
        %527 = vmatpush.msra.mxu0 %v481
        %528 = vmatpush.msra.mxu0 %v479
        %529 = vmatpush.msra.mxu0 %v477
        %530 = vmatpush.msra.mxu0 %v475
        %531 = vmatpush.msra.mxu0 %v473
        %532 = vmatpush.msra.mxu0 %v471
        %533 = vmatpush.msra.mxu0 %v469
        %534 = vmatpush.msra.mxu0 %v467
        %535 = vmatpush.msra.mxu0 %v465
        %536 = vmatpush.msra.mxu0 %v463
        %537 = vmatpush.msra.mxu0 %v461
        %538 = vmatpush.msra.mxu0 %v459
        %539 = vmatpush.msra.mxu0 %v457
        %540 = vmatpush.msra.mxu0 %v455
        %541 = vmatmul.f32.gmra.mxu0 %v451
        %v542 = vpop.f32.mrf.mxu0
        %v543 = vadd.f32 %v521, %v542
        %544 = vmatmul.f32.gmra.mxu0 %v453
        %v545 = vpop.f32.mrf.mxu0
        %v546 = vadd.f32 %v521, %v545
        %547 = vdwg.mxu0
        %548 = vmatpush.msra.mxu0 %v517
        %549 = vmatpush.msra.mxu0 %v515
        %550 = vmatpush.msra.mxu0 %v513
        %551 = vmatpush.msra.mxu0 %v511
        %552 = vmatpush.msra.mxu0 %v509
        %553 = vmatpush.msra.mxu0 %v507
        %554 = vmatpush.msra.mxu0 %v505
        %555 = vmatpush.msra.mxu0 %v503
        %556 = vmatpush.msra.mxu0 %v501
        %557 = vmatpush.msra.mxu0 %v499
        %558 = vmatpush.msra.mxu0 %v497
        %559 = vmatpush.msra.mxu0 %v495
        %560 = vmatpush.msra.mxu0 %v493
        %561 = vmatpush.msra.mxu0 %v491
        %562 = vmatpush.msra.mxu0 %v489
        %563 = vmatpush.msra.mxu0 %v487
        %564 = vmatmul.f32.gmra.mxu0 %v452
        %v565 = vpop.f32.mrf.mxu0
        %v566 = vadd.f32 %v543, %v565
        %567 = vmatmul.f32.gmra.mxu0 %v454
        %v568 = vpop.f32.mrf.mxu0
        %v569 = vadd.f32 %v546, %v568
        %570 = vdwg.mxu0
        %571 = vmatpush.msra.mxu0 %v486
        %572 = vmatpush.msra.mxu0 %v484
        %573 = vmatpush.msra.mxu0 %v482
        %574 = vmatpush.msra.mxu0 %v480
        %575 = vmatpush.msra.mxu0 %v478
        %576 = vmatpush.msra.mxu0 %v476
        %577 = vmatpush.msra.mxu0 %v474
        %578 = vmatpush.msra.mxu0 %v472
        %579 = vmatpush.msra.mxu0 %v470
        %580 = vmatpush.msra.mxu0 %v468
        %581 = vmatpush.msra.mxu0 %v466
        %582 = vmatpush.msra.mxu0 %v464
        %583 = vmatpush.msra.mxu0 %v462
        %584 = vmatpush.msra.mxu0 %v460
        %585 = vmatpush.msra.mxu0 %v458
        %586 = vmatpush.msra.mxu0 %v456
        %587 = vmatmul.f32.gmra.mxu0 %v451
        %v588 = vpop.f32.mrf.mxu0
        %v589 = vadd.f32 %v522, %v588
        %590 = vmatmul.f32.gmra.mxu0 %v453
        %v591 = vpop.f32.mrf.mxu0
        %v592 = vadd.f32 %v522, %v591
        %593 = vdwg.mxu0
        %594 = vmatpush.msra.mxu0 %v518
        %595 = vmatpush.msra.mxu0 %v516
        %596 = vmatpush.msra.mxu0 %v514
        %597 = vmatpush.msra.mxu0 %v512
        %598 = vmatpush.msra.mxu0 %v510
        %599 = vmatpush.msra.mxu0 %v508
        %600 = vmatpush.msra.mxu0 %v506
        %601 = vmatpush.msra.mxu0 %v504
        %602 = vmatpush.msra.mxu0 %v502
        %603 = vmatpush.msra.mxu0 %v500
        %604 = vmatpush.msra.mxu0 %v498
        %605 = vmatpush.msra.mxu0 %v496
        %606 = vmatpush.msra.mxu0 %v494
        %607 = vmatpush.msra.mxu0 %v492
        %608 = vmatpush.msra.mxu0 %v490
        %609 = vmatpush.msra.mxu0 %v488
        %610 = vmatmul.f32.gmra.mxu0 %v452
        %v611 = vpop.f32.mrf.mxu0
        %v612 = vadd.f32 %v589, %v611
        %613 = vmatmul.f32.gmra.mxu0 %v454
        %v614 = vpop.f32.mrf.mxu0
        %v615 = vadd.f32 %v592, %v614
        %616 = vdwg.mxu0
        %v617 = vmax.f32 %v566, 0.0
        %v618 = vmax.f32 %v612, 0.0
        %v619 = vmax.f32 %v569, 0.0
        %v620 = vmax.f32 %v615, 0.0
        %v621 = vld [vmem:[#allocation10] sm:$0xff]
        %v622 = vld [vmem:[#allocation10 + $0x8] sm:$0xff]
        %v623 = vld [vmem:[#allocation10 + $0x10] sm:$0xff]
        %v624 = vld [vmem:[#allocation10 + $0x18] sm:$0xff]
        %v625 = vld [vmem:[#allocation10 + $0x20] sm:$0xff]
        %v626 = vld [vmem:[#allocation10 + $0x28] sm:$0xff]
        %v627 = vld [vmem:[#allocation10 + $0x30] sm:$0xff]
        %v628 = vld [vmem:[#allocation10 + $0x38] sm:$0xff]
        %v629 = vld [vmem:[#allocation10 + $0x40] sm:$0xff]
        %v630 = vld [vmem:[#allocation10 + $0x48] sm:$0xff]
        %v631 = vld [vmem:[#allocation10 + $0x50] sm:$0xff]
        %v632 = vld [vmem:[#allocation10 + $0x58] sm:$0xff]
        %v633 = vld [vmem:[#allocation10 + $0x60] sm:$0xff]
        %v634 = vld [vmem:[#allocation10 + $0x68] sm:$0xff]
        %v635 = vld [vmem:[#allocation10 + $0x70] sm:$0xff]
        %v636 = vld [vmem:[#allocation10 + $0x78] sm:$0xff]
        %v637 = vld [vmem:[#allocation10 + $0x80] sm:$0xff]
        %v638 = vld [vmem:[#allocation10 + $0x88] sm:$0xff]
        %v639 = vld [vmem:[#allocation10 + $0x90] sm:$0xff]
        %v640 = vld [vmem:[#allocation10 + $0x98] sm:$0xff]
        %v641 = vld [vmem:[#allocation10 + $0xa0] sm:$0xff]
        %v642 = vld [vmem:[#allocation10 + $0xa8] sm:$0xff]
        %v643 = vld [vmem:[#allocation10 + $0xb0] sm:$0xff]
        %v644 = vld [vmem:[#allocation10 + $0xb8] sm:$0xff]
        %v645 = vld [vmem:[#allocation10 + $0xc0] sm:$0xff]
        %v646 = vld [vmem:[#allocation10 + $0xc8] sm:$0xff]
        %v647 = vld [vmem:[#allocation10 + $0xd0] sm:$0xff]
        %v648 = vld [vmem:[#allocation10 + $0xd8] sm:$0xff]
        %v649 = vld [vmem:[#allocation10 + $0xe0] sm:$0xff]
        %v650 = vld [vmem:[#allocation10 + $0xe8] sm:$0xff]
        %v651 = vld [vmem:[#allocation10 + $0xf0] sm:$0xff]
        %v652 = vld [vmem:[#allocation10 + $0xf8] sm:$0xff]
        %v653 = vld [vmem:[%s6] sm:$0x1]
        %v655 = vperm.slane %v653, 0
        %657 = vmatpush.msra.mxu0 %v636
        %658 = vmatpush.msra.mxu0 %v635
        %659 = vmatpush.msra.mxu0 %v634
        %660 = vmatpush.msra.mxu0 %v633
        %661 = vmatpush.msra.mxu0 %v632
        %662 = vmatpush.msra.mxu0 %v631
        %663 = vmatpush.msra.mxu0 %v630
        %664 = vmatpush.msra.mxu0 %v629
        %665 = vmatpush.msra.mxu0 %v628
        %666 = vmatpush.msra.mxu0 %v627
        %667 = vmatpush.msra.mxu0 %v626
        %668 = vmatpush.msra.mxu0 %v625
        %669 = vmatpush.msra.mxu0 %v624
        %670 = vmatpush.msra.mxu0 %v623
        %671 = vmatpush.msra.mxu0 %v622
        %672 = vmatpush.msra.mxu0 %v621
        %673 = vmatmul.f32.gmra.mxu0 %v617
        %v674 = vpop.f32.mrf.mxu0
        %v675 = vadd.f32 %v655, %v674
        %676 = vmatmul.f32.gmra.mxu0 %v619
        %v677 = vpop.f32.mrf.mxu0
        %v678 = vadd.f32 %v655, %v677
        %679 = vdwg.mxu0
        %680 = vmatpush.msra.mxu0 %v652
        %681 = vmatpush.msra.mxu0 %v651
        %682 = vmatpush.msra.mxu0 %v650
        %683 = vmatpush.msra.mxu0 %v649
        %684 = vmatpush.msra.mxu0 %v648
        %685 = vmatpush.msra.mxu0 %v647
        %686 = vmatpush.msra.mxu0 %v646
        %687 = vmatpush.msra.mxu0 %v645
        %688 = vmatpush.msra.mxu0 %v644
        %689 = vmatpush.msra.mxu0 %v643
        %690 = vmatpush.msra.mxu0 %v642
        %691 = vmatpush.msra.mxu0 %v641
        %692 = vmatpush.msra.mxu0 %v640
        %693 = vmatpush.msra.mxu0 %v639
        %694 = vmatpush.msra.mxu0 %v638
        %695 = vmatpush.msra.mxu0 %v637
        %696 = vmatmul.f32.gmra.mxu0 %v618
        %v697 = vpop.f32.mrf.mxu0
        %v698 = vadd.f32 %v675, %v697
        %699 = vmatmul.f32.gmra.mxu0 %v620
        %v700 = vpop.f32.mrf.mxu0
        %v701 = vadd.f32 %v678, %v700
        %702 = vdwg.mxu0
        %703 = vst [vmem:[%s362] sm:$0xff] %v698
        %704 = vst [vmem:[%s362 + $0x8] sm:$0xff] %v701
        %s705 = sand.u32 %s186, 1
        %s706 = scalar_lea.sflag [#allocation4], %s705
        %s707 = sand.u32 %s186, 1
        %s708 = smul.addr %s707, 16
        %s709 = scalar_lea.vmem [#allocation11], %s708
        // Predicated region
        $region69: #{tpu_custom_call.1} parent=47 // pred_check
          %p710 = pneg %p196
        $region70: #{tpu_custom_call.1} parent=47 // pred_check_branch
          %712 = sbr.rel (%p710) target = $region72
        $region71: #{tpu_custom_call.1} parent=47 // pred_region
          %s713 = smul.u32 2, %s26
          %715 = vsyncadd %s706, 0
          %s716 = smul.addr %s713, 8
          %s717 = scalar_lea.hbm %s7, %s716
          %s718 = sshll.u32 %s709, 4
          %s719 = int_to_ptr.vmem [resolvable:$true] %s718
          %s720 = sshll.u32 %s717, 4
          %s721 = int_to_ptr.hbm [resolvable:$true] %s720
          %726 = dma.vmem_to_hbm [thread:$0]  %s719, 256, %s721, %s706, 128, 128, 8
        $region72: #{tpu_custom_call.1} parent=47 // pred_fallthru
          _
      $region48: #{tpu_custom_call.1} parent=5 // pred_fallthru
        _
      %p727 = scmp.le.s32.totalorder 2, %s21
      // Predicated region
      $region73: #{tpu_custom_call.1} parent=5 // pred_check
        %p728 = pneg %p727
      $region74: #{tpu_custom_call.1} parent=5 // pred_check_branch
        %730 = sbr.rel (%p728) target = $region76
      $region75: #{tpu_custom_call.1} parent=5 // pred_region
        %s731 = ssub.s32 %s21, 2
        // Predicated region
        $region77: #{tpu_custom_call.1} parent=75 // pred_check
          %p732 = pneg %p202
        $region78: #{tpu_custom_call.1} parent=75 // pred_check_branch
          %734 = sbr.rel (%p732) target = $region80
        $region79: #{tpu_custom_call.1} parent=75 // pred_region
          %s735 = sand.u32 %s187, 1
          %s736 = scalar_lea.sflag [#allocation4], %s735
          %s737 = sand.u32 %s187, 1
          %s738 = smul.addr %s737, 16
          %s739 = scalar_lea.vmem [#allocation11], %s738
          %741 = dma.done %s736, 256
        $region80: #{tpu_custom_call.1} parent=75 // pred_fallthru
          _
      $region76: #{tpu_custom_call.1} parent=5 // pred_fallthru
        _
    $region6: #{tpu_custom_call.1} parent=1 // loop_footer
      %s25 = sadd.s32 1, %s21
    $region7: #{tpu_custom_call.1} parent=1 // loop_footer_branch
      %20 = sbr.rel target = $region3
    $region8: #{tpu_custom_call.1} parent=1 // loop_exit
      _
    %742 = vsyncpa [#allocation3], 1
    %s743 = scalar_lea.sflag [#allocation3], 1
    %744 = vsyncpa %s743, 1
    %745 = vsyncpa [#allocation6], 1
    %746 = vsyncpa [#allocation9], 1
    %747 = vsyncpa [#allocation4], 1
    %s748 = scalar_lea.sflag [#allocation4], 1
    %749 = vsyncpa %s748, 1

</llo_original>
